<compile_context>
chip_gen: v7x
topology: tpu7x:2x2x1
jax: 0.10.0
libtpu: 0.0.40
codegen_flags: <defaults>
</compile_context>

<pallas_src>
import functools
import math

import jax
import jax.numpy as jnp
from jax.experimental import pallas as pl
from jax.experimental.pallas import tpu as pltpu


def _round_up(x, m):
    return (x + m - 1) // m * m


# ---------------------------------------------------------------------------
# Kernel 1: row pre-pass — optional fused relu(x)^2, RMS-norm, per-row int8-valued
# activation quantization.  Emits integer-valued xq (bf16) and per-row 1/a_scale.
# ---------------------------------------------------------------------------
def _act_quant_kernel(x_ref, xq_ref, inv_ref, *, apply_relu_sq):
    x = x_ref[...].astype(jnp.float32)                        # [tm, K]
    if apply_relu_sq:
        x = jnp.square(jnp.maximum(x, 0.0))                   # fused relu(x)**2

    # F.rms_norm(x, (K,)) with default eps = finfo(f32).eps
    eps = jnp.finfo(jnp.float32).eps
    ms = jnp.mean(x * x, axis=-1, keepdims=True)
    xn = x * jax.lax.rsqrt(ms + eps)

    # activation_norm_quant: per-row symmetric int8 quantization (integers kept)
    absmax = jnp.max(jnp.abs(xn), axis=-1, keepdims=True)
    a_scale = 127.0 / jnp.maximum(absmax, 1e-5)
    xq = jnp.clip(jnp.round(xn * a_scale), -128.0, 127.0)     # integers, exact in bf16

    xq_ref[...] = xq.astype(xq_ref.dtype)
    inv_ref[...] = 1.0 / a_scale


# ---------------------------------------------------------------------------
# Kernel 2: tiled GEMM.  xq[tm,K] (bf16 ints) @ wT[K,tn] (bf16 ternary) on the MXU,
# f32 accumulation, per-row (activation * weight) scale applied in the epilogue.
# ---------------------------------------------------------------------------
def _bitlinear_matmul_kernel(xq_ref, wt_ref, scale_ref, o_ref):
    acc = jnp.dot(xq_ref[...], wt_ref[...], preferred_element_type=jnp.float32)
    o_ref[...] = (acc * scale_ref[...]).astype(o_ref.dtype)


def bit_linear(x, weight, *, pre_relu_sq=False, tm=256, tn=256):
    """Forward of the quantized Linear: [..., K] x [N, K] -> [..., N].

    If `pre_relu_sq` is True, relu(x)**2 is fused into the activation pre-pass
    (used to fold the FeedForward nonlinearity into the following layer).
    """
    *lead, K = x.shape
    N, Kw = weight.shape
    assert K == Kw
    M = math.prod(lead) if lead else 1
    x2d = x.reshape(M, K).astype(jnp.float32)

    # --- one-time weight quantization, hoisted out of the kernel (static weights;
    #     in real inference this would be cached offline) ---
    w = weight.astype(jnp.float32)
    w_unscale = jnp.maximum(jnp.mean(jnp.abs(w)), 1e-5)        # == 1 / w_scale
    w_scale = 1.0 / w_unscale
    wq_t = jnp.clip(jnp.round(w * w_scale), -1.0, 1.0).T       # [K, N] ternary
    wq_t = wq_t.astype(jnp.bfloat16)

    # --- tile sizes / padding (lane-dense output: tn is a multiple of 128) ---
    tm = min(tm, _round_up(M, 8))
    m_pad = _round_up(M, tm)
    tn = min(tn, _round_up(N, 128))
    n_pad = _round_up(N, tn)
    if m_pad != M:
        x2d = jnp.pad(x2d, ((0, m_pad - M), (0, 0)))
    if n_pad != N:
        wq_t = jnp.pad(wq_t, ((0, 0), (0, n_pad - N)))

    # --- pre-pass: (relu^2) + RMS-norm + activation quant, once per row tile ---
    xq, inv_a = pl.pallas_call(
        functools.partial(_act_quant_kernel, apply_relu_sq=pre_relu_sq),
        grid=(m_pad // tm,),
        out_shape=(
            jax.ShapeDtypeStruct((m_pad, K), jnp.bfloat16),
            jax.ShapeDtypeStruct((m_pad, 1), jnp.float32),
        ),
        in_specs=[pl.BlockSpec((tm, K), lambda i: (i, 0))],
        out_specs=(
            pl.BlockSpec((tm, K), lambda i: (i, 0)),
            pl.BlockSpec((tm, 1), lambda i: (i, 0)),
        ),
        compiler_params=pltpu.CompilerParams(dimension_semantics=("parallel",)),
    )(x2d)

    # fold the global weight scale into the per-row activation scale (epilogue factor)
    row_scale = inv_a * w_unscale                              # [m_pad, 1] f32

    # --- tiled GEMM over (M, N); both axes parallel (megacore on v7x) ---
    out = pl.pallas_call(
        _bitlinear_matmul_kernel,
        grid=(m_pad // tm, n_pad // tn),
        out_shape=jax.ShapeDtypeStruct((m_pad, n_pad), x.dtype),
        in_specs=[
            pl.BlockSpec((tm, K), lambda i, j: (i, 0)),
            pl.BlockSpec((K, tn), lambda i, j: (0, j)),
            pl.BlockSpec((tm, 1), lambda i, j: (i, 0)),
        ],
        out_specs=pl.BlockSpec((tm, tn), lambda i, j: (i, j)),
        compiler_params=pltpu.CompilerParams(
            dimension_semantics=("parallel", "parallel"),
            vmem_limit_bytes=32 * 1024 * 1024,
        ),
    )(xq, wq_t, row_scale)

    return out[:M, :N].reshape(*lead, N)


def feed_forward(x, w_fc1, w_fc2, w_proj):
    """FeedForward.forward: c_fc_1 -> relu^2 -> c_fc_2 -> relu^2 -> c_proj -> dropout."""
    h = bit_linear(x, w_fc1, pre_relu_sq=False)
    h = bit_linear(h, w_fc2, pre_relu_sq=True)    # relu(h)^2 fused into the pre-pass
    h = bit_linear(h, w_proj, pre_relu_sq=True)   # relu(h)^2 fused into the pre-pass
    # TODO(synk): nn.Dropout is identity in eval / inference forward; training-mode
    # RNG masking is not implemented here.
    return h


# ---------------------------------------------------------------------------
# Pure-JAX references mirroring the PyTorch forward semantics (forward values only).
# ---------------------------------------------------------------------------
def _ref_bit_linear(x, weight):
    eps = jnp.finfo(jnp.float32).eps
    xn = x * jax.lax.rsqrt(jnp.mean(x * x, axis=-1, keepdims=True) + eps)
    a_scale = 127.0 / jnp.maximum(jnp.max(jnp.abs(xn), axis=-1, keepdims=True), 1e-5)
    xq = jnp.clip(jnp.round(xn * a_scale), -128.0, 127.0) / a_scale
    w_scale = 1.0 / jnp.maximum(jnp.mean(jnp.abs(weight)), 1e-5)
    wq = jnp.clip(jnp.round(weight * w_scale), -1.0, 1.0) / w_scale
    return xq @ wq.T


def _ref_feed_forward(x, w1, w2, w3):
    h = _ref_bit_linear(x, w1)
    h = jnp.square(jnp.maximum(h, 0.0))
    h = _ref_bit_linear(h, w2)
    h = jnp.square(jnp.maximum(h, 0.0))
    return _ref_bit_linear(h, w3)


if __name__ == "__main__":
    batch, seq = 2, 8
    n_embd, n_hidden = 32, 128   # config.n_embd, config.n_hidden; config.dropout = 0.0

    key = jax.random.PRNGKey(0)
    kx, k1, k2, k3 = jax.random.split(key, 4)

    def init_linear(k, out_f, in_f):
        # matches Linear.init_linear: U(-bound, bound), bound = sqrt(3)*0.5/sqrt(in_f)
        std = 0.5 * in_f ** (-0.5)
        bound = (3.0 ** 0.5) * std
        return jax.random.uniform(
            k, (out_f, in_f), dtype=jnp.float32, minval=-bound, maxval=bound
        )

    w_fc1 = init_linear(k1, n_hidden, n_embd)
    w_fc2 = init_linear(k2, n_hidden, n_hidden)
    w_proj = init_linear(k3, n_embd, n_hidden)
    x = jax.random.normal(kx, (batch, seq, n_embd), dtype=jnp.float32)

    ff = jax.jit(feed_forward)
    y = jax.block_until_ready(ff(x, w_fc1, w_fc2, w_proj))
    assert y.shape == (batch, seq, n_embd), y.shape

    # Single-layer check (tight in the mean; max tolerance is looser because a
    # quantization rounding boundary can flip between the Pallas and XLA float paths).
    y1 = jax.block_until_ready(bit_linear(x, w_fc1))
    y1_ref = _ref_bit_linear(x, w_fc1)
    assert jnp.mean(jnp.abs(y1 - y1_ref)) < 1e-4, jnp.mean(jnp.abs(y1 - y1_ref))
    assert jnp.max(jnp.abs(y1 - y1_ref)) < 5e-2, jnp.max(jnp.abs(y1 - y1_ref))

    # Full 3-layer stack: rare rounding-boundary flips can cascade through the two
    # downstream quantizers, so the element-wise bound is loose while the mean must
    # still be tiny (any real bug shows up as O(0.1) mean error).
    y_ref = _ref_feed_forward(x, w_fc1, w_fc2, w_proj)
    assert jnp.mean(jnp.abs(y - y_ref)) < 1e-3, jnp.mean(jnp.abs(y - y_ref))
    assert jnp.max(jnp.abs(y - y_ref)) < 1e-1, jnp.max(jnp.abs(y - y_ref))

    print("KERNEL_OK")
</pallas_src>

<mosaic_0001>
module attributes {stable_mosaic.version = 11 : i64} {
  func.func @_act_quant_kernel(%arg0: i32, %arg1: memref<16x32xf32, #tpu.memory_space<vmem>>, %arg2: memref<16x32xbf16, #tpu.memory_space<vmem>>, %arg3: memref<16x1xf32, #tpu.memory_space<vmem>>) attributes {dimension_semantics = [#tpu.dimension_semantics<parallel>], iteration_bounds = array<i64: 1>, scalar_prefetch = 0 : i64, scratch_operands = 0 : i64, tpu.core_type = #tpu.core_type<tc>, window_params = [{transform_indices = @transform_0, window_bounds = array<i64: 16, 32>}, {transform_indices = @transform_1, window_bounds = array<i64: 16, 32>}, {transform_indices = @transform_2, window_bounds = array<i64: 16, 1>}]} {
    %c0 = arith.constant 0 : index
    %c0_0 = arith.constant 0 : index
    %0 = vector.load %arg1[%c0, %c0_0] : memref<16x32xf32, #tpu.memory_space<vmem>>, vector<16x32xf32>
    %1 = arith.mulf %0, %0 : vector<16x32xf32>
    %cst = arith.constant dense<0.000000e+00> : vector<16xf32>
    %2 = vector.multi_reduction <add>, %1, %cst [1] : vector<16x32xf32> to vector<16xf32>
    %3 = vector.shape_cast %2 : vector<16xf32> to vector<16x1xf32>
    %cst_1 = arith.constant 3.200000e+01 : f32
    %4 = vector.broadcast %cst_1 : f32 to vector<16x1xf32>
    %5 = arith.divf %3, %4 : vector<16x1xf32>
    %cst_2 = arith.constant 1.1920929E-7 : f32
    %6 = vector.broadcast %cst_2 : f32 to vector<16x1xf32>
    %7 = arith.addf %5, %6 : vector<16x1xf32>
    %8 = math.rsqrt %7 : vector<16x1xf32>
    %9 = vector.broadcast %8 : vector<16x1xf32> to vector<16x32xf32>
    %10 = arith.mulf %0, %9 : vector<16x32xf32>
    %11 = math.absf %10 : vector<16x32xf32>
    %cst_3 = arith.constant dense<0xFF800000> : vector<16xf32>
    %12 = vector.multi_reduction <maximumf>, %11, %cst_3 [1] : vector<16x32xf32> to vector<16xf32>
    %13 = vector.shape_cast %12 : vector<16xf32> to vector<16x1xf32>
    %cst_4 = arith.constant 9.99999974E-6 : f32
    %14 = vector.broadcast %cst_4 : f32 to vector<16x1xf32>
    %15 = arith.maximumf %13, %14 : vector<16x1xf32>
    %cst_5 = arith.constant 1.270000e+02 : f32
    %16 = vector.broadcast %cst_5 : f32 to vector<16x1xf32>
    %17 = arith.divf %16, %15 : vector<16x1xf32>
    %18 = vector.broadcast %17 : vector<16x1xf32> to vector<16x32xf32>
    %19 = arith.mulf %10, %18 : vector<16x32xf32>
    %20 = math.roundeven %19 : vector<16x32xf32>
    %cst_6 = arith.constant -1.280000e+02 : f32
    %cst_7 = arith.constant 1.270000e+02 : f32
    %21 = vector.broadcast %cst_6 : f32 to vector<16x32xf32>
    %22 = arith.maximumf %21, %20 : vector<16x32xf32>
    %23 = vector.broadcast %cst_7 : f32 to vector<16x32xf32>
    %24 = arith.minimumf %23, %22 : vector<16x32xf32>
    %25 = arith.truncf %24 : vector<16x32xf32> to vector<16x32xbf16>
    %c0_8 = arith.constant 0 : index
    %c0_9 = arith.constant 0 : index
    %26 = vector.load %arg2[%c0_8, %c0_9] : memref<16x32xbf16, #tpu.memory_space<vmem>>, vector<16x32xbf16>
    tpu.vector_store %arg2[%c0_8, %c0_9], %25 {strides = array<i32>} : memref<16x32xbf16, #tpu.memory_space<vmem>>, vector<16x32xbf16>,
    %cst_10 = arith.constant 1.000000e+00 : f32
    %27 = vector.broadcast %cst_10 : f32 to vector<16x1xf32>
    %28 = arith.divf %27, %17 : vector<16x1xf32>
    %c0_11 = arith.constant 0 : index
    %c0_12 = arith.constant 0 : index
    %29 = vector.load %arg3[%c0_11, %c0_12] : memref<16x1xf32, #tpu.memory_space<vmem>>, vector<16x1xf32>
    tpu.vector_store %arg3[%c0_11, %c0_12], %28 {strides = array<i32>} : memref<16x1xf32, #tpu.memory_space<vmem>>, vector<16x1xf32>,
    return
  }
  func.func @transform_0(%arg0: i32) -> (i32, i32) {
    %c0_i32 = arith.constant 0 : i32
    %c0_i32_0 = arith.constant 0 : i32
    return %arg0, %c0_i32 : i32, i32
  }
  func.func @transform_1(%arg0: i32) -> (i32, i32) {
    %c0_i32 = arith.constant 0 : i32
    %c0_i32_0 = arith.constant 0 : i32
    return %arg0, %c0_i32 : i32, i32
  }
  func.func @transform_2(%arg0: i32) -> (i32, i32) {
    %c0_i32 = arith.constant 0 : i32
    %c0_i32_0 = arith.constant 0 : i32
    return %arg0, %c0_i32 : i32, i32
  }
}

module attributes {stable_mosaic.version = 11 : i64} {
  func.func @_bitlinear_matmul_kernel(%arg0: i32, %arg1: i32, %arg2: memref<16x32xbf16, #tpu.memory_space<vmem>>, %arg3: memref<32x128xbf16, #tpu.memory_space<vmem>>, %arg4: memref<16x1xf32, #tpu.memory_space<vmem>>, %arg5: memref<16x128xf32, #tpu.memory_space<vmem>>) attributes {dimension_semantics = [#tpu.dimension_semantics<parallel>, #tpu.dimension_semantics<parallel>], iteration_bounds = array<i64: 1, 1>, scalar_prefetch = 0 : i64, scratch_operands = 0 : i64, tpu.core_type = #tpu.core_type<tc>, window_params = [{transform_indices = @transform_0, window_bounds = array<i64: 16, 32>}, {transform_indices = @transform_1, window_bounds = array<i64: 32, 128>}, {transform_indices = @transform_2, window_bounds = array<i64: 16, 1>}, {transform_indices = @transform_3, window_bounds = array<i64: 16, 128>}]} {
    %c0 = arith.constant 0 : index
    %c0_0 = arith.constant 0 : index
    %0 = vector.load %arg2[%c0, %c0_0] : memref<16x32xbf16, #tpu.memory_space<vmem>>, vector<16x32xbf16>
    %c0_1 = arith.constant 0 : index
    %c0_2 = arith.constant 0 : index
    %1 = vector.load %arg3[%c0_1, %c0_2] : memref<32x128xbf16, #tpu.memory_space<vmem>>, vector<32x128xbf16>
    %cst = arith.constant dense<0.000000e+00> : vector<16x128xf32>
    %2 = tpu.matmul %0, %1, %cst {dimension_numbers = #tpu.dot_dimension_numbers<[1], [0], [0], [1], [0, 0, 1, 1], [], []>} : vector<16x32xbf16>, vector<32x128xbf16>, vector<16x128xf32> -> vector<16x128xf32>
    %c0_3 = arith.constant 0 : index
    %c0_4 = arith.constant 0 : index
    %3 = vector.load %arg4[%c0_3, %c0_4] : memref<16x1xf32, #tpu.memory_space<vmem>>, vector<16x1xf32>
    %4 = vector.broadcast %3 : vector<16x1xf32> to vector<16x128xf32>
    %5 = arith.mulf %2, %4 : vector<16x128xf32>
    %c0_5 = arith.constant 0 : index
    %c0_6 = arith.constant 0 : index
    %6 = vector.load %arg5[%c0_5, %c0_6] : memref<16x128xf32, #tpu.memory_space<vmem>>, vector<16x128xf32>
    tpu.vector_store %arg5[%c0_5, %c0_6], %5 {strides = array<i32>} : memref<16x128xf32, #tpu.memory_space<vmem>>, vector<16x128xf32>,
    return
  }
  func.func @transform_0(%arg0: i32, %arg1: i32) -> (i32, i32) {
    %c0_i32 = arith.constant 0 : i32
    %c0_i32_0 = arith.constant 0 : i32
    return %arg0, %c0_i32 : i32, i32
  }
  func.func @transform_1(%arg0: i32, %arg1: i32) -> (i32, i32) {
    %c0_i32 = arith.constant 0 : i32
    %c0_i32_0 = arith.constant 0 : i32
    return %c0_i32, %arg1 : i32, i32
  }
  func.func @transform_2(%arg0: i32, %arg1: i32) -> (i32, i32) {
    %c0_i32 = arith.constant 0 : i32
    %c0_i32_0 = arith.constant 0 : i32
    return %arg0, %c0_i32 : i32, i32
  }
  func.func @transform_3(%arg0: i32, %arg1: i32) -> (i32, i32) {
    %c0_i32 = arith.constant 0 : i32
    return %arg0, %arg1 : i32, i32
  }
}

module attributes {stable_mosaic.version = 11 : i64} {
  func.func @_act_quant_kernel(%arg0: i32, %arg1: memref<16x128xf32, #tpu.memory_space<vmem>>, %arg2: memref<16x128xbf16, #tpu.memory_space<vmem>>, %arg3: memref<16x1xf32, #tpu.memory_space<vmem>>) attributes {dimension_semantics = [#tpu.dimension_semantics<parallel>], iteration_bounds = array<i64: 1>, scalar_prefetch = 0 : i64, scratch_operands = 0 : i64, tpu.core_type = #tpu.core_type<tc>, window_params = [{transform_indices = @transform_0, window_bounds = array<i64: 16, 128>}, {transform_indices = @transform_1, window_bounds = array<i64: 16, 128>}, {transform_indices = @transform_2, window_bounds = array<i64: 16, 1>}]} {
    %c0 = arith.constant 0 : index
    %c0_0 = arith.constant 0 : index
    %0 = vector.load %arg1[%c0, %c0_0] : memref<16x128xf32, #tpu.memory_space<vmem>>, vector<16x128xf32>
    %cst = arith.constant 0.000000e+00 : f32
    %1 = vector.broadcast %cst : f32 to vector<16x128xf32>
    %2 = arith.maximumf %0, %1 : vector<16x128xf32>
    %3 = arith.mulf %2, %2 : vector<16x128xf32>
    %4 = arith.mulf %3, %3 : vector<16x128xf32>
    %cst_1 = arith.constant dense<0.000000e+00> : vector<16xf32>
    %5 = vector.multi_reduction <add>, %4, %cst_1 [1] : vector<16x128xf32> to vector<16xf32>
    %6 = vector.shape_cast %5 : vector<16xf32> to vector<16x1xf32>
    %cst_2 = arith.constant 1.280000e+02 : f32
    %7 = vector.broadcast %cst_2 : f32 to vector<16x1xf32>
    %8 = arith.divf %6, %7 : vector<16x1xf32>
    %cst_3 = arith.constant 1.1920929E-7 : f32
    %9 = vector.broadcast %cst_3 : f32 to vector<16x1xf32>
    %10 = arith.addf %8, %9 : vector<16x1xf32>
    %11 = math.rsqrt %10 : vector<16x1xf32>
    %12 = vector.broadcast %11 : vector<16x1xf32> to vector<16x128xf32>
    %13 = arith.mulf %3, %12 : vector<16x128xf32>
    %14 = math.absf %13 : vector<16x128xf32>
    %cst_4 = arith.constant dense<0xFF800000> : vector<16xf32>
    %15 = vector.multi_reduction <maximumf>, %14, %cst_4 [1] : vector<16x128xf32> to vector<16xf32>
    %16 = vector.shape_cast %15 : vector<16xf32> to vector<16x1xf32>
    %cst_5 = arith.constant 9.99999974E-6 : f32
    %17 = vector.broadcast %cst_5 : f32 to vector<16x1xf32>
    %18 = arith.maximumf %16, %17 : vector<16x1xf32>
    %cst_6 = arith.constant 1.270000e+02 : f32
    %19 = vector.broadcast %cst_6 : f32 to vector<16x1xf32>
    %20 = arith.divf %19, %18 : vector<16x1xf32>
    %21 = vector.broadcast %20 : vector<16x1xf32> to vector<16x128xf32>
    %22 = arith.mulf %13, %21 : vector<16x128xf32>
    %23 = math.roundeven %22 : vector<16x128xf32>
    %cst_7 = arith.constant -1.280000e+02 : f32
    %cst_8 = arith.constant 1.270000e+02 : f32
    %24 = vector.broadcast %cst_7 : f32 to vector<16x128xf32>
    %25 = arith.maximumf %24, %23 : vector<16x128xf32>
    %26 = vector.broadcast %cst_8 : f32 to vector<16x128xf32>
    %27 = arith.minimumf %26, %25 : vector<16x128xf32>
    %28 = arith.truncf %27 : vector<16x128xf32> to vector<16x128xbf16>
    %c0_9 = arith.constant 0 : index
    %c0_10 = arith.constant 0 : index
    %29 = vector.load %arg2[%c0_9, %c0_10] : memref<16x128xbf16, #tpu.memory_space<vmem>>, vector<16x128xbf16>
    tpu.vector_store %arg2[%c0_9, %c0_10], %28 {strides = array<i32>} : memref<16x128xbf16, #tpu.memory_space<vmem>>, vector<16x128xbf16>,
    %cst_11 = arith.constant 1.000000e+00 : f32
    %30 = vector.broadcast %cst_11 : f32 to vector<16x1xf32>
    %31 = arith.divf %30, %20 : vector<16x1xf32>
    %c0_12 = arith.constant 0 : index
    %c0_13 = arith.constant 0 : index
    %32 = vector.load %arg3[%c0_12, %c0_13] : memref<16x1xf32, #tpu.memory_space<vmem>>, vector<16x1xf32>
    tpu.vector_store %arg3[%c0_12, %c0_13], %31 {strides = array<i32>} : memref<16x1xf32, #tpu.memory_space<vmem>>, vector<16x1xf32>,
    return
  }
  func.func @transform_0(%arg0: i32) -> (i32, i32) {
    %c0_i32 = arith.constant 0 : i32
    %c0_i32_0 = arith.constant 0 : i32
    return %arg0, %c0_i32 : i32, i32
  }
  func.func @transform_1(%arg0: i32) -> (i32, i32) {
    %c0_i32 = arith.constant 0 : i32
    %c0_i32_0 = arith.constant 0 : i32
    return %arg0, %c0_i32 : i32, i32
  }
  func.func @transform_2(%arg0: i32) -> (i32, i32) {
    %c0_i32 = arith.constant 0 : i32
    %c0_i32_0 = arith.constant 0 : i32
    return %arg0, %c0_i32 : i32, i32
  }
}

module attributes {stable_mosaic.version = 11 : i64} {
  func.func @_bitlinear_matmul_kernel(%arg0: i32, %arg1: i32, %arg2: memref<16x128xbf16, #tpu.memory_space<vmem>>, %arg3: memref<128x128xbf16, #tpu.memory_space<vmem>>, %arg4: memref<16x1xf32, #tpu.memory_space<vmem>>, %arg5: memref<16x128xf32, #tpu.memory_space<vmem>>) attributes {dimension_semantics = [#tpu.dimension_semantics<parallel>, #tpu.dimension_semantics<parallel>], iteration_bounds = array<i64: 1, 1>, scalar_prefetch = 0 : i64, scratch_operands = 0 : i64, tpu.core_type = #tpu.core_type<tc>, window_params = [{transform_indices = @transform_0, window_bounds = array<i64: 16, 128>}, {transform_indices = @transform_1, window_bounds = array<i64: 128, 128>}, {transform_indices = @transform_2, window_bounds = array<i64: 16, 1>}, {transform_indices = @transform_3, window_bounds = array<i64: 16, 128>}]} {
    %c0 = arith.constant 0 : index
    %c0_0 = arith.constant 0 : index
    %0 = vector.load %arg2[%c0, %c0_0] : memref<16x128xbf16, #tpu.memory_space<vmem>>, vector<16x128xbf16>
    %c0_1 = arith.constant 0 : index
    %c0_2 = arith.constant 0 : index
    %1 = vector.load %arg3[%c0_1, %c0_2] : memref<128x128xbf16, #tpu.memory_space<vmem>>, vector<128x128xbf16>
    %cst = arith.constant dense<0.000000e+00> : vector<16x128xf32>
    %2 = tpu.matmul %0, %1, %cst {dimension_numbers = #tpu.dot_dimension_numbers<[1], [0], [0], [1], [0, 0, 1, 1], [], []>} : vector<16x128xbf16>, vector<128x128xbf16>, vector<16x128xf32> -> vector<16x128xf32>
    %c0_3 = arith.constant 0 : index
    %c0_4 = arith.constant 0 : index
    %3 = vector.load %arg4[%c0_3, %c0_4] : memref<16x1xf32, #tpu.memory_space<vmem>>, vector<16x1xf32>
    %4 = vector.broadcast %3 : vector<16x1xf32> to vector<16x128xf32>
    %5 = arith.mulf %2, %4 : vector<16x128xf32>
    %c0_5 = arith.constant 0 : index
    %c0_6 = arith.constant 0 : index
    %6 = vector.load %arg5[%c0_5, %c0_6] : memref<16x128xf32, #tpu.memory_space<vmem>>, vector<16x128xf32>
    tpu.vector_store %arg5[%c0_5, %c0_6], %5 {strides = array<i32>} : memref<16x128xf32, #tpu.memory_space<vmem>>, vector<16x128xf32>,
    return
  }
  func.func @transform_0(%arg0: i32, %arg1: i32) -> (i32, i32) {
    %c0_i32 = arith.constant 0 : i32
    %c0_i32_0 = arith.constant 0 : i32
    return %arg0, %c0_i32 : i32, i32
  }
  func.func @transform_1(%arg0: i32, %arg1: i32) -> (i32, i32) {
    %c0_i32 = arith.constant 0 : i32
    %c0_i32_0 = arith.constant 0 : i32
    return %c0_i32, %arg1 : i32, i32
  }
  func.func @transform_2(%arg0: i32, %arg1: i32) -> (i32, i32) {
    %c0_i32 = arith.constant 0 : i32
    %c0_i32_0 = arith.constant 0 : i32
    return %arg0, %c0_i32 : i32, i32
  }
  func.func @transform_3(%arg0: i32, %arg1: i32) -> (i32, i32) {
    %c0_i32 = arith.constant 0 : i32
    return %arg0, %arg1 : i32, i32
  }
}

</mosaic_0001>

<llo_original>
// kernel: feed_forward.6
$region0: #{feed_forward.6}
  #allocation0 [shape = 'u32[]', space=smem, size = 0x4, offset = 0x4, fixed_abs, tag = 'smem constant byte address 0x4 - core index']
  #allocation1 [shape = 'u32[144,128]{1,0:T(1,128)}', space=vmem, size = 0x12000, scoped, tag = 'internal scratch']
  %s0 = inlined_call_operand.hbm [shape: f32[16,32], index: 0, kind: input, shape index: {}]
  %s1 = inlined_call_operand.vmem [shape: bf16[16,32], index: 1, kind: output, shape index: {0}]
  %s2 = inlined_call_operand.vmem [shape: f32[16,1], index: 2, kind: output, shape index: {1}]
  %3 = xla_tuple %s1, %s2
  %s4 = sld [smem:[#allocation0]]
  $region26: #{feed_forward.6} parent=0
    _
  %s6 = ssub.s32 1, %s4
  %s7 = scalar_select 0, %s6, %s4
  $region1: #{feed_forward.6} parent=0
    #allocation2 [shape = 'u8[8192]{0}', space=vmem, size = 0x2000, scoped, tag = 'input window, operand 0, single buffered']
    #allocation3 [shape = 's32[1]{0}', space=sflag, size = 0x4, scoped, tag = 'scoped memory for feed_forward.6']
    %8 = vsyncpa [#allocation3], 0
    // Predicated region
    $region2: #{feed_forward.6} parent=1 // pred_check
      _
    $region3: #{feed_forward.6} parent=1 // pred_check_branch
      %10 = sbr.rel (0) target = $region5
    $region4: #{feed_forward.6} parent=1 // pred_region
      %s12 = ssub.s32 256, 256
      %13 = vsyncadd [#allocation3], %s12
      %s14 = sshll.u32 [#allocation2], 4
      %s15 = int_to_ptr.vmem [resolvable:$true] %s14
      %20 = dma.hbm_to_vmem [thread:$0]  %s0, 256, %s15, [#allocation3], 128, 128, 8
    $region5: #{feed_forward.6} parent=1 // pred_fallthru
      _
    // Predicated region
    $region6: #{feed_forward.6} parent=1 // pred_check
      _
    $region7: #{feed_forward.6} parent=1 // pred_check_branch
      %22 = sbr.rel (0) target = $region9
    $region8: #{feed_forward.6} parent=1 // pred_region
      %23 = dma.done [#allocation3], 256
    $region9: #{feed_forward.6} parent=1 // pred_fallthru
      _
    %v24 = vld [vmem:[#allocation2] sm:$0xff]
    %v25 = vld [vmem:[#allocation2 + $0x8] sm:$0xff]
    %v26 = vmul.f32 %v24, %v24
    %v27 = vmul.f32 %v25, %v25
    %vm28 = vcmask 261120
    %v29 = vsel %vm28, %v26, 0.0
    %30 = vadd.xlane.f32.xlu0 %v29
    %v31 = vpop.xlane.xlu0 %30
    %v32 = vsel %vm28, %v27, 0.0
    %33 = vadd.xlane.f32.xlu0 %v32
    %v34 = vpop.xlane.xlu0 %33
    %v35 = vrcp.pop 32.0
    %v36 = vmul.f32 %v31, %v35
    %v37 = vmul.f32 %v34, %v35
    %v38 = vadd.f32 %v36, 1.1920929e-07
    %v39 = vadd.f32 %v37, 1.1920929e-07
    %v40 = vrsqrt.pop %v38
    %v41 = vrsqrt.pop %v39
    %v42 = vmul.f32 %v24, %v40
    %v43 = vmul.f32 %v25, %v41
    %v44 = vand.u32 2147483647, %v42
    %v45 = vand.u32 2147483647, %v43
    %v46 = vsel %vm28, %v44, -inf
    %47 = vmax.xlane.f32.xlu0 %v46
    %v48 = vpop.xlane.xlu0 %47
    %v49 = vsel %vm28, %v45, -inf
    %50 = vmax.xlane.f32.xlu0 %v49
    %v51 = vpop.xlane.xlu0 %50
    %v52 = vmax.f32 %v48, 1e-05
    %v53 = vmax.f32 %v51, 1e-05
    %v54 = vrcp.pop %v52
    %v55 = vmul.f32 127.0, %v54
    %v56 = vrcp.pop %v53
    %v57 = vmul.f32 127.0, %v56
    %v58 = vmul.f32 %v42, %v55
    %v59 = vmul.f32 %v43, %v57
    %v60 = vround.ne.pseudo %v58
    %v61 = vround.ne.pseudo %v59
    %v62 = vmax.f32 %v60, -128.0
    %v63 = vmax.f32 %v61, -128.0
    %v64 = vmin.f32 %v62, 127.0
    %v65 = vmin.f32 %v63, 127.0
    %v66 = vpack.c.bf16 %v65, %v64
    %v68 = vunpack.c.l.b16 %v66
    %v69 = vunpack.c.h.b16 %v66
    %v70 = vpack.c.b16 %v68, %v68
    %v71 = vpack.c.b16 %v69, %v69
    %vm74 = vcmask 257024
    %75 = vst.msk [vmem:[%s1] sm:$0xf] %vm74, %v70
    %76 = vst.msk [vmem:[%s1 + $0x4] sm:$0xf] %vm74, %v71
    %v77 = vrcp.pop %v55
    %v78 = vmul.f32 1.0, %v77
    %v79 = vrcp.pop %v57
    %v80 = vmul.f32 1.0, %v79
    %vm81 = vcmask 7168
    %82 = vst.msk [vmem:[%s2] sm:$0xff] %vm81, %v78
    %83 = vst.msk [vmem:[%s2 + $0x8] sm:$0xff] %vm81, %v80
    // Predicated region
    $region10: #{feed_forward.6} parent=1 // pred_check
      _
    $region11: #{feed_forward.6} parent=1 // pred_check_branch
      %85 = sbr.rel (0) target = $region13
    $region12: #{feed_forward.6} parent=1 // pred_region
      _
    $region13: #{feed_forward.6} parent=1 // pred_fallthru
      _
    // Predicated region
    $region14: #{feed_forward.6} parent=1 // pred_check
      _
    $region15: #{feed_forward.6} parent=1 // pred_check_branch
      %87 = sbr.rel (0) target = $region17
    $region16: #{feed_forward.6} parent=1 // pred_region
      _
    $region17: #{feed_forward.6} parent=1 // pred_fallthru
      _
    // Predicated region
    $region18: #{feed_forward.6} parent=1 // pred_check
      _
    $region19: #{feed_forward.6} parent=1 // pred_check_branch
      %89 = sbr.rel (0) target = $region21
    $region20: #{feed_forward.6} parent=1 // pred_region
      _
    $region21: #{feed_forward.6} parent=1 // pred_fallthru
      _
    // Predicated region
    $region22: #{feed_forward.6} parent=1 // pred_check
      _
    $region23: #{feed_forward.6} parent=1 // pred_check_branch
      %91 = sbr.rel (0) target = $region25
    $region24: #{feed_forward.6} parent=1 // pred_region
      _
    $region25: #{feed_forward.6} parent=1 // pred_fallthru
      _
    %92 = vsyncpa [#allocation3], 1

// kernel: feed_forward.7
$region0: #{feed_forward.7}
  #allocation0 [shape = 'u32[]', space=smem, size = 0x4, offset = 0x4, fixed_abs, tag = 'smem constant byte address 0x4 - core index']
  #allocation1 [shape = 'u32[144,128]{1,0:T(1,128)}', space=vmem, size = 0x12000, scoped, tag = 'internal scratch']
  %s0 = inlined_call_operand.vmem [shape: bf16[16,32], index: 0, kind: input, shape index: {}]
  %s1 = inlined_call_operand.vmem [shape: bf16[32,128], index: 1, kind: input, shape index: {}]
  %s2 = inlined_call_operand.vmem [shape: f32[16,1], index: 2, kind: input, shape index: {}]
  %s3 = inlined_call_operand.vmem [shape: f32[16,128], index: 3, kind: output, shape index: {}]
  %s4 = sld [smem:[#allocation0]]
  $region22: #{feed_forward.7} parent=0
    _
  %s6 = ssub.s32 1, %s4
  %s7 = scalar_select 0, %s6, %s4
  // Predicated region
  $region2: #{feed_forward.7} parent=0 // pred_check
    _
  $region3: #{feed_forward.7} parent=0 // pred_check_branch
    %9 = sbr.rel (0) target = $region5
  $region4: #{feed_forward.7} parent=0 // pred_region
    _
  $region5: #{feed_forward.7} parent=0 // pred_fallthru
    _
  // Predicated region
  $region6: #{feed_forward.7} parent=0 // pred_check
    _
  $region7: #{feed_forward.7} parent=0 // pred_check_branch
    %11 = sbr.rel (0) target = $region9
  $region8: #{feed_forward.7} parent=0 // pred_region
    _
  $region9: #{feed_forward.7} parent=0 // pred_fallthru
    _
  // Predicated region
  $region10: #{feed_forward.7} parent=0 // pred_check
    _
  $region11: #{feed_forward.7} parent=0 // pred_check_branch
    %13 = sbr.rel (0) target = $region13
  $region12: #{feed_forward.7} parent=0 // pred_region
    _
  $region13: #{feed_forward.7} parent=0 // pred_fallthru
    _
  %v15 = vld [vmem:[%s0] sm:$0xf]
  %v16 = vld [vmem:[%s0 + $0x4] sm:$0xf]
  %v17 = vld [vmem:[%s1] sm:$0xf]
  %v18 = vld [vmem:[%s1 + $0x4] sm:$0xf]
  %v19 = vld [vmem:[%s1 + $0x8] sm:$0xf]
  %v20 = vld [vmem:[%s1 + $0xc] sm:$0xf]
  %v23 = vunpack.c.l.b16 %v15
  %v24 = vunpack.c.l.b16 %v16
  %v25 = vpack.c.b16 %v24, %v23
  %v30 = vunpack.c.l.b16 %v17
  %v31 = vunpack.c.l.b16 %v18
  %v32 = vunpack.c.l.b16 %v19
  %v33 = vunpack.c.l.b16 %v20
  %v34 = vpack.c.b16 %v31, %v30
  %v35 = vpack.c.b16 %v33, %v32
  %vm38 = vcmask 261120
  %v40 = vsel %vm38, %v25, 0
  %42 = vmatprep.subr.bf16.mxu0 0
  %43 = vmatpush1.bf16.msra.mxu0 %v34
  %44 = vmatprep.subr.bf16.mxu0 0
  %45 = vmatpush1.bf16.msra.mxu0 %v35
  %46 = vmatprep.subr.bf16.mxu0 0
  %47 = vmatpush1.bf16.msra.mxu0 0
  %48 = vmatprep.subr.bf16.mxu0 0
  %49 = vmatpush1.bf16.msra.mxu0 0
  %50 = vmatprep.subr.bf16.mxu0 0
  %51 = vmatpush1.bf16.msra.mxu0 0
  %52 = vmatprep.subr.bf16.mxu0 0
  %53 = vmatpush1.bf16.msra.mxu0 0
  %54 = vmatprep.subr.bf16.mxu0 0
  %55 = vmatpush1.bf16.msra.mxu0 0
  %56 = vmatprep.subr.bf16.mxu0 0
  %57 = vmatpush1.bf16.msra.mxu0 0
  %58 = vmatprep.subr.bf16.mxu0 0
  %59 = vmatpush1.bf16.msra.mxu0 0
  %60 = vmatprep.subr.bf16.mxu0 0
  %61 = vmatpush1.bf16.msra.mxu0 0
  %62 = vmatprep.subr.bf16.mxu0 0
  %63 = vmatpush1.bf16.msra.mxu0 0
  %64 = vmatprep.subr.bf16.mxu0 0
  %65 = vmatpush1.bf16.msra.mxu0 0
  %66 = vmatprep.subr.bf16.mxu0 0
  %67 = vmatpush1.bf16.msra.mxu0 0
  %68 = vmatprep.subr.bf16.mxu0 0
  %69 = vmatpush1.bf16.msra.mxu0 0
  %70 = vmatprep.subr.bf16.mxu0 0
  %71 = vmatpush1.bf16.msra.mxu0 0
  %72 = vmatprep.subr.bf16.mxu0 0
  %73 = vmatpush1.bf16.msra.mxu0 0
  %74 = vmatprep.mubr.bf16.mxu0 0
  %75 = vmatmul.mubr.bf16.gmra.mrb[0].mxu0 %v40
  %v76 = vpop.f32.mrb[0].mxu0
  %v77 = vadd.f32 0.0, %v76
  %v78 = vpop.f32.mrb[0].mxu0
  %v79 = vpop.f32.mrb[0].mxu0
  %v80 = vadd.f32 0.0, %v79
  %v81 = vpop.f32.mrb[0].mxu0
  %82 = vdwg.mxu0
  %v83 = vld [vmem:[%s2] sm:$0xff]
  %v84 = vld [vmem:[%s2 + $0x8] sm:$0xff]
  %86 = vset.pattern.permute.xlu0 0
  %87 = vperm.xlu0 %86, %v83
  %v88 = vpop.permute.xlu0 %87
  %91 = vset.pattern.permute.xlu0 0
  %92 = vperm.xlu0 %91, %v84
  %v93 = vpop.permute.xlu0 %92
  %v95 = vmul.f32 %v77, %v88
  %v96 = vmul.f32 %v80, %v93
  %97 = vst [vmem:[%s3] sm:$0xff] %v95
  %98 = vst [vmem:[%s3 + $0x8] sm:$0xff] %v96
  // Predicated region
  $region14: #{feed_forward.7} parent=0 // pred_check
    _
  $region15: #{feed_forward.7} parent=0 // pred_check_branch
    %100 = sbr.rel (0) target = $region17
  $region16: #{feed_forward.7} parent=0 // pred_region
    _
  $region17: #{feed_forward.7} parent=0 // pred_fallthru
    _
  // Predicated region
  $region18: #{feed_forward.7} parent=0 // pred_check
    _
  $region19: #{feed_forward.7} parent=0 // pred_check_branch
    %102 = sbr.rel (0) target = $region21
  $region20: #{feed_forward.7} parent=0 // pred_region
    _
  $region21: #{feed_forward.7} parent=0 // pred_fallthru
    _

// kernel: feed_forward.8
$region0: #{feed_forward.8}
  #allocation0 [shape = 'u32[]', space=smem, size = 0x4, offset = 0x4, fixed_abs, tag = 'smem constant byte address 0x4 - core index']
  #allocation1 [shape = 'u32[144,128]{1,0:T(1,128)}', space=vmem, size = 0x12000, scoped, tag = 'internal scratch']
  %s0 = inlined_call_operand.vmem [shape: f32[16,128], index: 0, kind: input, shape index: {}]
  %s1 = inlined_call_operand.vmem [shape: bf16[16,128], index: 1, kind: output, shape index: {0}]
  %s2 = inlined_call_operand.vmem [shape: f32[16,1], index: 2, kind: output, shape index: {1}]
  %3 = xla_tuple %s1, %s2
  %s4 = sld [smem:[#allocation0]]
  $region22: #{feed_forward.8} parent=0
    _
  %s6 = ssub.s32 1, %s4
  %s7 = scalar_select 0, %s6, %s4
  // Predicated region
  $region2: #{feed_forward.8} parent=0 // pred_check
    _
  $region3: #{feed_forward.8} parent=0 // pred_check_branch
    %9 = sbr.rel (0) target = $region5
  $region4: #{feed_forward.8} parent=0 // pred_region
    _
  $region5: #{feed_forward.8} parent=0 // pred_fallthru
    _
  %v10 = vld [vmem:[%s0] sm:$0xff]
  %v11 = vld [vmem:[%s0 + $0x8] sm:$0xff]
  %v12 = vmax.f32 %v10, 0.0
  %v13 = vmax.f32 %v11, 0.0
  %v14 = vmul.f32 %v12, %v12
  %v15 = vmul.f32 %v13, %v13
  %v16 = vmul.f32 %v14, %v14
  %v17 = vmul.f32 %v15, %v15
  %18 = vadd.xlane.f32.xlu0 %v16
  %v19 = vpop.xlane.xlu0 %18
  %20 = vadd.xlane.f32.xlu0 %v17
  %v21 = vpop.xlane.xlu0 %20
  %v22 = vrcp.pop 128.0
  %v23 = vmul.f32 %v19, %v22
  %v24 = vmul.f32 %v21, %v22
  %v25 = vadd.f32 %v23, 1.1920929e-07
  %v26 = vadd.f32 %v24, 1.1920929e-07
  %v27 = vrsqrt.pop %v25
  %v28 = vrsqrt.pop %v26
  %v29 = vmul.f32 %v14, %v27
  %v30 = vmul.f32 %v15, %v28
  %v31 = vand.u32 2147483647, %v29
  %v32 = vand.u32 2147483647, %v30
  %33 = vmax.xlane.f32.xlu0 %v31
  %v34 = vpop.xlane.xlu0 %33
  %35 = vmax.xlane.f32.xlu0 %v32
  %v36 = vpop.xlane.xlu0 %35
  %v37 = vmax.f32 %v34, 1e-05
  %v38 = vmax.f32 %v36, 1e-05
  %v39 = vrcp.pop %v37
  %v40 = vmul.f32 127.0, %v39
  %v41 = vrcp.pop %v38
  %v42 = vmul.f32 127.0, %v41
  %v43 = vmul.f32 %v29, %v40
  %v44 = vmul.f32 %v30, %v42
  %v45 = vround.ne.pseudo %v43
  %v46 = vround.ne.pseudo %v44
  %v47 = vmax.f32 %v45, -128.0
  %v48 = vmax.f32 %v46, -128.0
  %v49 = vmin.f32 %v47, 127.0
  %v50 = vmin.f32 %v48, 127.0
  %v51 = vpack.c.bf16 %v50, %v49
  %v53 = vunpack.c.l.b16 %v51
  %v54 = vunpack.c.h.b16 %v51
  %v55 = vpack.c.b16 %v53, %v53
  %v56 = vpack.c.b16 %v54, %v54
  %59 = vst [vmem:[%s1] sm:$0xf] %v55
  %60 = vst [vmem:[%s1 + $0x4] sm:$0xf] %v56
  %v61 = vrcp.pop %v40
  %v62 = vmul.f32 1.0, %v61
  %v63 = vrcp.pop %v42
  %v64 = vmul.f32 1.0, %v63
  %vm65 = vcmask 7168
  %66 = vst.msk [vmem:[%s2] sm:$0xff] %vm65, %v62
  %67 = vst.msk [vmem:[%s2 + $0x8] sm:$0xff] %vm65, %v64
  // Predicated region
  $region6: #{feed_forward.8} parent=0 // pred_check
    _
  $region7: #{feed_forward.8} parent=0 // pred_check_branch
    %69 = sbr.rel (0) target = $region9
  $region8: #{feed_forward.8} parent=0 // pred_region
    _
  $region9: #{feed_forward.8} parent=0 // pred_fallthru
    _
  // Predicated region
  $region10: #{feed_forward.8} parent=0 // pred_check
    _
  $region11: #{feed_forward.8} parent=0 // pred_check_branch
    %71 = sbr.rel (0) target = $region13
  $region12: #{feed_forward.8} parent=0 // pred_region
    _
  $region13: #{feed_forward.8} parent=0 // pred_fallthru
    _
  // Predicated region
  $region14: #{feed_forward.8} parent=0 // pred_check
    _
  $region15: #{feed_forward.8} parent=0 // pred_check_branch
    %73 = sbr.rel (0) target = $region17
  $region16: #{feed_forward.8} parent=0 // pred_region
    _
  $region17: #{feed_forward.8} parent=0 // pred_fallthru
    _
  // Predicated region
  $region18: #{feed_forward.8} parent=0 // pred_check
    _
  $region19: #{feed_forward.8} parent=0 // pred_check_branch
    %75 = sbr.rel (0) target = $region21
  $region20: #{feed_forward.8} parent=0 // pred_region
    _
  $region21: #{feed_forward.8} parent=0 // pred_fallthru
    _

// kernel: feed_forward.9
$region0: #{feed_forward.9}
  #allocation0 [shape = 'u32[]', space=smem, size = 0x4, offset = 0x4, fixed_abs, tag = 'smem constant byte address 0x4 - core index']
  #allocation1 [shape = 'u32[144,128]{1,0:T(1,128)}', space=vmem, size = 0x12000, scoped, tag = 'internal scratch']
  %s0 = inlined_call_operand.vmem [shape: bf16[16,128], index: 0, kind: input, shape index: {}]
  %s1 = inlined_call_operand.vmem [shape: bf16[128,128], index: 1, kind: input, shape index: {}]
  %s2 = inlined_call_operand.vmem [shape: f32[16,1], index: 2, kind: input, shape index: {}]
  %s3 = inlined_call_operand.vmem [shape: f32[16,128], index: 3, kind: output, shape index: {}]
  %s4 = sld [smem:[#allocation0]]
  $region22: #{feed_forward.9} parent=0
    _
  %s6 = ssub.s32 1, %s4
  %s7 = scalar_select 0, %s6, %s4
  // Predicated region
  $region2: #{feed_forward.9} parent=0 // pred_check
    _
  $region3: #{feed_forward.9} parent=0 // pred_check_branch
    %9 = sbr.rel (0) target = $region5
  $region4: #{feed_forward.9} parent=0 // pred_region
    _
  $region5: #{feed_forward.9} parent=0 // pred_fallthru
    _
  // Predicated region
  $region6: #{feed_forward.9} parent=0 // pred_check
    _
  $region7: #{feed_forward.9} parent=0 // pred_check_branch
    %11 = sbr.rel (0) target = $region9
  $region8: #{feed_forward.9} parent=0 // pred_region
    _
  $region9: #{feed_forward.9} parent=0 // pred_fallthru
    _
  // Predicated region
  $region10: #{feed_forward.9} parent=0 // pred_check
    _
  $region11: #{feed_forward.9} parent=0 // pred_check_branch
    %13 = sbr.rel (0) target = $region13
  $region12: #{feed_forward.9} parent=0 // pred_region
    _
  $region13: #{feed_forward.9} parent=0 // pred_fallthru
    _
  %v15 = vld [vmem:[%s0] sm:$0xf]
  %v16 = vld [vmem:[%s0 + $0x4] sm:$0xf]
  %v17 = vld [vmem:[%s1] sm:$0xf]
  %v18 = vld [vmem:[%s1 + $0x4] sm:$0xf]
  %v19 = vld [vmem:[%s1 + $0x8] sm:$0xf]
  %v20 = vld [vmem:[%s1 + $0xc] sm:$0xf]
  %v21 = vld [vmem:[%s1 + $0x10] sm:$0xf]
  %v22 = vld [vmem:[%s1 + $0x14] sm:$0xf]
  %v23 = vld [vmem:[%s1 + $0x18] sm:$0xf]
  %v24 = vld [vmem:[%s1 + $0x1c] sm:$0xf]
  %v25 = vld [vmem:[%s1 + $0x20] sm:$0xf]
  %v26 = vld [vmem:[%s1 + $0x24] sm:$0xf]
  %v27 = vld [vmem:[%s1 + $0x28] sm:$0xf]
  %v28 = vld [vmem:[%s1 + $0x2c] sm:$0xf]
  %v29 = vld [vmem:[%s1 + $0x30] sm:$0xf]
  %v30 = vld [vmem:[%s1 + $0x34] sm:$0xf]
  %v31 = vld [vmem:[%s1 + $0x38] sm:$0xf]
  %v32 = vld [vmem:[%s1 + $0x3c] sm:$0xf]
  %v35 = vunpack.c.l.b16 %v15
  %v36 = vunpack.c.l.b16 %v16
  %v37 = vpack.c.b16 %v36, %v35
  %v55 = vunpack.c.l.b16 %v17
  %v56 = vunpack.c.l.b16 %v18
  %v57 = vunpack.c.l.b16 %v19
  %v58 = vunpack.c.l.b16 %v20
  %v59 = vunpack.c.l.b16 %v21
  %v60 = vunpack.c.l.b16 %v22
  %v61 = vunpack.c.l.b16 %v23
  %v62 = vunpack.c.l.b16 %v24
  %v63 = vunpack.c.l.b16 %v25
  %v64 = vunpack.c.l.b16 %v26
  %v65 = vunpack.c.l.b16 %v27
  %v66 = vunpack.c.l.b16 %v28
  %v67 = vunpack.c.l.b16 %v29
  %v68 = vunpack.c.l.b16 %v30
  %v69 = vunpack.c.l.b16 %v31
  %v70 = vunpack.c.l.b16 %v32
  %v71 = vpack.c.b16 %v56, %v55
  %v72 = vpack.c.b16 %v58, %v57
  %v73 = vpack.c.b16 %v60, %v59
  %v74 = vpack.c.b16 %v62, %v61
  %v75 = vpack.c.b16 %v64, %v63
  %v76 = vpack.c.b16 %v66, %v65
  %v77 = vpack.c.b16 %v68, %v67
  %v78 = vpack.c.b16 %v70, %v69
  %87 = vmatprep.subr.bf16.mxu0 0
  %88 = vmatpush1.bf16.msra.mxu0 %v71
  %89 = vmatprep.subr.bf16.mxu0 0
  %90 = vmatpush1.bf16.msra.mxu0 %v72
  %91 = vmatprep.subr.bf16.mxu0 0
  %92 = vmatpush1.bf16.msra.mxu0 %v73
  %93 = vmatprep.subr.bf16.mxu0 0
  %94 = vmatpush1.bf16.msra.mxu0 %v74
  %95 = vmatprep.subr.bf16.mxu0 0
  %96 = vmatpush1.bf16.msra.mxu0 %v75
  %97 = vmatprep.subr.bf16.mxu0 0
  %98 = vmatpush1.bf16.msra.mxu0 %v76
  %99 = vmatprep.subr.bf16.mxu0 0
  %100 = vmatpush1.bf16.msra.mxu0 %v77
  %101 = vmatprep.subr.bf16.mxu0 0
  %102 = vmatpush1.bf16.msra.mxu0 %v78
  %103 = vmatprep.subr.bf16.mxu0 0
  %104 = vmatpush1.bf16.msra.mxu0 0
  %105 = vmatprep.subr.bf16.mxu0 0
  %106 = vmatpush1.bf16.msra.mxu0 0
  %107 = vmatprep.subr.bf16.mxu0 0
  %108 = vmatpush1.bf16.msra.mxu0 0
  %109 = vmatprep.subr.bf16.mxu0 0
  %110 = vmatpush1.bf16.msra.mxu0 0
  %111 = vmatprep.subr.bf16.mxu0 0
  %112 = vmatpush1.bf16.msra.mxu0 0
  %113 = vmatprep.subr.bf16.mxu0 0
  %114 = vmatpush1.bf16.msra.mxu0 0
  %115 = vmatprep.subr.bf16.mxu0 0
  %116 = vmatpush1.bf16.msra.mxu0 0
  %117 = vmatprep.subr.bf16.mxu0 0
  %118 = vmatpush1.bf16.msra.mxu0 0
  %119 = vmatprep.mubr.bf16.mxu0 0
  %120 = vmatmul.mubr.bf16.gmra.mrb[0].mxu0 %v37
  %v121 = vpop.f32.mrb[0].mxu0
  %v122 = vadd.f32 0.0, %v121
  %v123 = vpop.f32.mrb[0].mxu0
  %v124 = vpop.f32.mrb[0].mxu0
  %v125 = vadd.f32 0.0, %v124
  %v126 = vpop.f32.mrb[0].mxu0
  %127 = vdwg.mxu0
  %v128 = vld [vmem:[%s2] sm:$0xff]
  %v129 = vld [vmem:[%s2 + $0x8] sm:$0xff]
  %131 = vset.pattern.permute.xlu0 0
  %132 = vperm.xlu0 %131, %v128
  %v133 = vpop.permute.xlu0 %132
  %136 = vset.pattern.permute.xlu0 0
  %137 = vperm.xlu0 %136, %v129
  %v138 = vpop.permute.xlu0 %137
  %v140 = vmul.f32 %v122, %v133
  %v141 = vmul.f32 %v125, %v138
  %142 = vst [vmem:[%s3] sm:$0xff] %v140
  %143 = vst [vmem:[%s3 + $0x8] sm:$0xff] %v141
  // Predicated region
  $region14: #{feed_forward.9} parent=0 // pred_check
    _
  $region15: #{feed_forward.9} parent=0 // pred_check_branch
    %145 = sbr.rel (0) target = $region17
  $region16: #{feed_forward.9} parent=0 // pred_region
    _
  $region17: #{feed_forward.9} parent=0 // pred_fallthru
    _
  // Predicated region
  $region18: #{feed_forward.9} parent=0 // pred_check
    _
  $region19: #{feed_forward.9} parent=0 // pred_check_branch
    %147 = sbr.rel (0) target = $region21
  $region20: #{feed_forward.9} parent=0 // pred_region
    _
  $region21: #{feed_forward.9} parent=0 // pred_fallthru
    _

</llo_original>
